<compile_context>
chip_gen: v7x
topology: tpu7x:2x2x1
jax: 0.10.0
libtpu: 0.0.40
codegen_flags: <defaults>
</compile_context>

<pallas_src>
from functools import partial

import jax
import jax.numpy as jnp
from jax import lax
from jax.experimental import pallas as pl
from jax.experimental.pallas import tpu as pltpu

# Layer dims of DigitsNet: Linear(64,32) -> Linear(32,16) -> Linear(16,16) -> Linear(16,10)
_DIMS = [(64, 32), (32, 16), (16, 16), (16, 10)]


def _mlp_kernel(x_ref, w_ref, b_ref, o_ref, *, sub):
    """One batch tile of the whole forward pass, entirely in VMEM.

    x_ref : (tb, 64)        f32   (cast to bf16 after the VMEM load)
    w_ref : (4, 128, 128)   bf16  layer i weight in [i, :in_i, :out_i], zero-padded
    b_ref : (4, 128)        f32   layer i bias   in [i, :out_i],        zero-padded
    o_ref : (tb, 10)        f32
    sub   : static sub-chunk rows; tb % sub == 0
    """
    # Resident parameter loads — once per grid step, reused by every sub-chunk.
    w0 = w_ref[0, :64, :]          # Ref-level slice: load only the 64 real rows of W0
    w1 = w_ref[1]
    w2 = w_ref[2]
    w3 = w_ref[3]
    b0 = b_ref[0:1, :]
    b1 = b_ref[1:2, :]
    b2 = b_ref[2:3, :]
    b3 = b_ref[3:4, :]

    n_sub = x_ref.shape[0] // sub

    def body(s, carry):
        row = pl.multiple_of(s * sub, sub)
        # Cast to bf16 in VMEM (x travels HBM->VMEM as f32 exactly once).
        xc = x_ref[pl.ds(row, sub), :].astype(jnp.bfloat16)          # (sub, 64)

        # Layer 0: only cols 0:32 of w0 are real; padded cols stay exactly 0.
        h = jnp.dot(xc, w0, preferred_element_type=jnp.float32) + b0
        h = jnp.maximum(h, 0.0).astype(jnp.bfloat16)                 # (sub, 128)

        # Layer 1: padded rows/cols of W1 are zero, padded cols of h are zero -> exact.
        h = jnp.dot(h, w1, preferred_element_type=jnp.float32) + b1
        h = jnp.maximum(h, 0.0).astype(jnp.bfloat16)

        # Layer 2
        h = jnp.dot(h, w2, preferred_element_type=jnp.float32) + b2
        h = jnp.maximum(h, 0.0).astype(jnp.bfloat16)

        # Output layer (no ReLU); only the first 10 columns are real.
        out = jnp.dot(h, w3, preferred_element_type=jnp.float32) + b3
        o_ref[pl.ds(row, sub), :] = out[:, :10].astype(o_ref.dtype)
        return carry

    # Unrolled so the LLO scheduler sees the whole chain and activations stay in vregs.
    lax.fori_loop(0, n_sub, body, 0, unroll=True)


def pack_params(params):
    """Pack per-layer (in,out) f32 weights / (1,out) f32 biases into ONE lane-padded bf16
    weight block and ONE f32 bias block.

    Call this ONCE per parameter set and reuse the result — it is a launch-side cost that
    should not run on every forward call.

    IMPORTANT: all padded regions are exactly zero; layers 1-3 rely on that for correctness
    (ReLU(0+0)=0 keeps the padded hidden lanes zero).  Do not change the zero init.
    """
    w_packed = jnp.zeros((4, 128, 128), jnp.bfloat16)
    b_packed = jnp.zeros((4, 128), jnp.float32)
    for i, (fi, fo) in enumerate(_DIMS):
        w = params[f"w{i}"]
        b = params[f"b{i}"].reshape(-1)
        assert w.shape == (fi, fo) and b.shape == (fo,)
        w_packed = w_packed.at[i, :fi, :fo].set(w.astype(jnp.bfloat16))
        b_packed = b_packed.at[i, :fo].set(b.astype(jnp.float32))
    return w_packed, b_packed


def _pick_tiles(B, batch_tile, sub_chunk):
    """Choose (batch tile, inner sub-chunk) so that:
       * tb is a multiple of 8 sublanes (or the full batch),
       * tb is a multiple of the inner sub-chunk,
       * the grid has >= 2 steps when the batch allows it (keeps both v7x TCs busy)."""
    tb = min(batch_tile, B)
    if B >= 16:                                   # never collapse a real batch to grid=1
        tb = min(tb, pl.cdiv(B, 2))
    if tb < B:
        m = sub_chunk if tb >= sub_chunk else 8
        tb = max(m, (tb // m) * m)
    sub = sub_chunk if (tb >= sub_chunk and tb % sub_chunk == 0) else tb
    return tb, sub


def _vmem_limit_bytes(tb, sub):
    """Explicit scoped-VMEM request: double-buffered pipeline blocks + headroom for the
    (sub,128) intermediates.  Clamped to v7x's 64 MiB physical per-TC ceiling."""
    x_blk = tb * 64 * 4
    o_blk = tb * 10 * 4
    w_blk = 4 * 128 * 128 * 2
    b_blk = 4 * 128 * 4
    est = 2 * (x_blk + o_blk + w_blk + b_blk) + 6 * sub * 128 * 4 + (4 << 20)
    return int(min(max(est, 16 << 20), 64 << 20))


def digits_net_forward(x, w_packed, b_packed, *, batch_tile=2048, sub_chunk=256):
    """x: (B, 64) float32.  w_packed/b_packed: cached outputs of pack_params()."""
    B, D_in = x.shape
    assert D_in == 64
    assert w_packed.shape == (4, 128, 128) and b_packed.shape == (4, 128)

    tb, sub = _pick_tiles(B, batch_tile, sub_chunk)
    grid = (pl.cdiv(B, tb),)      # ragged tail handled by block masking + row independence

    kernel = partial(_mlp_kernel, sub=sub)

    return pl.pallas_call(
        kernel,
        out_shape=jax.ShapeDtypeStruct((B, 10), jnp.float32),
        grid_spec=pltpu.PrefetchScalarGridSpec(
            num_scalar_prefetch=0,
            grid=grid,
            in_specs=[
                pl.BlockSpec((tb, 64), lambda i: (i, 0)),           # streamed activations
                pl.BlockSpec((4, 128, 128), lambda i: (0, 0, 0)),   # packed weights (resident)
                pl.BlockSpec((4, 128), lambda i: (0, 0)),           # packed biases  (resident)
            ],
            out_specs=pl.BlockSpec((tb, 10), lambda i: (i, 0)),
        ),
        compiler_params=pltpu.CompilerParams(
            dimension_semantics=("parallel",),                      # batch axis -> both v7x TCs
            vmem_limit_bytes=_vmem_limit_bytes(tb, sub),
        ),
    )(x.astype(jnp.float32), w_packed, b_packed)


def init_params(key):
    """Deterministic init mimicking nn.Linear default U(-1/sqrt(fan_in), +1/sqrt(fan_in)).
    Weights stored as (in, out); biases as (1, out); all float32."""
    params = {}
    for idx, (fan_in, fan_out) in enumerate(_DIMS):
        key, kw, kb = jax.random.split(key, 3)
        bound = 1.0 / jnp.sqrt(jnp.float32(fan_in))
        params[f"w{idx}"] = jax.random.uniform(
            kw, (fan_in, fan_out), jnp.float32, -bound, bound)
        params[f"b{idx}"] = jax.random.uniform(
            kb, (1, fan_out), jnp.float32, -bound, bound)
    return params


def _reference_forward(x, params):
    h = jnp.maximum(x @ params["w0"] + params["b0"], 0.0)
    h = jnp.maximum(h @ params["w1"] + params["b1"], 0.0)
    h = jnp.maximum(h @ params["w2"] + params["b2"], 0.0)
    return h @ params["w3"] + params["b3"]


if __name__ == "__main__":
    key = jax.random.PRNGKey(0)
    key, kx = jax.random.split(key)

    # Small demo batch; _pick_tiles gives tb=256 -> grid=2 (both v7x TCs exercised).
    B = 512
    x = jax.random.normal(kx, (B, 64), jnp.float32)
    params = init_params(key)

    # Pack the parameters ONCE (hoisted out of the forward path).
    w_packed, b_packed = pack_params(params)
    w_packed, b_packed = jax.block_until_ready((w_packed, b_packed))

    out = digits_net_forward(x, w_packed, b_packed)
    out = jax.block_until_ready(out)

    ref = _reference_forward(x, params)        # pure-f32 reference
    assert out.shape == (B, 10)
    # bf16 weights/activations with f32 accumulation -> loosened tolerance vs f32 reference.
    # (If bit-closeness to the f32 PyTorch model matters, keep W0/x in f32 — weights are tiny.)
    assert jnp.allclose(out, ref, atol=5e-2, rtol=5e-2), "mismatch vs pure-JAX reference"

    print("KERNEL_OK")
</pallas_src>

<mosaic_0001>
module attributes {stable_mosaic.version = 11 : i64} {
  func.func @_mlp_kernel(%arg0: i32, %arg1: memref<256x64xf32, #tpu.memory_space<vmem>>, %arg2: memref<4x128x128xbf16, #tpu.memory_space<vmem>>, %arg3: memref<4x128xf32, #tpu.memory_space<vmem>>, %arg4: memref<256x10xf32, #tpu.memory_space<vmem>>) attributes {dimension_semantics = [#tpu.dimension_semantics<parallel>], iteration_bounds = array<i64: 2>, scalar_prefetch = 0 : i64, scratch_operands = 0 : i64, tpu.core_type = #tpu.core_type<tc>, window_params = [{transform_indices = @transform_0, window_bounds = array<i64: 256, 64>}, {pipeline_mode = #tpu.pipeline_mode<synchronous>, transform_indices = @transform_1, window_bounds = array<i64: 4, 128, 128>}, {pipeline_mode = #tpu.pipeline_mode<synchronous>, transform_indices = @transform_2, window_bounds = array<i64: 4, 128>}, {transform_indices = @transform_3, window_bounds = array<i64: 256, 10>}]} {
    %c0 = arith.constant 0 : index
    %c0_0 = arith.constant 0 : index
    %c0_1 = arith.constant 0 : index
    %0 = vector.load %arg2[%c0, %c0_0, %c0_1] : memref<4x128x128xbf16, #tpu.memory_space<vmem>>, vector<1x64x128xbf16>
    %1 = vector.shape_cast %0 : vector<1x64x128xbf16> to vector<64x128xbf16>
    %c1 = arith.constant 1 : index
    %c0_2 = arith.constant 0 : index
    %c0_3 = arith.constant 0 : index
    %2 = vector.load %arg2[%c1, %c0_2, %c0_3] : memref<4x128x128xbf16, #tpu.memory_space<vmem>>, vector<1x128x128xbf16>
    %3 = vector.shape_cast %2 : vector<1x128x128xbf16> to vector<128x128xbf16>
    %c2 = arith.constant 2 : index
    %c0_4 = arith.constant 0 : index
    %c0_5 = arith.constant 0 : index
    %4 = vector.load %arg2[%c2, %c0_4, %c0_5] : memref<4x128x128xbf16, #tpu.memory_space<vmem>>, vector<1x128x128xbf16>
    %5 = vector.shape_cast %4 : vector<1x128x128xbf16> to vector<128x128xbf16>
    %c3 = arith.constant 3 : index
    %c0_6 = arith.constant 0 : index
    %c0_7 = arith.constant 0 : index
    %6 = vector.load %arg2[%c3, %c0_6, %c0_7] : memref<4x128x128xbf16, #tpu.memory_space<vmem>>, vector<1x128x128xbf16>
    %7 = vector.shape_cast %6 : vector<1x128x128xbf16> to vector<128x128xbf16>
    %c0_8 = arith.constant 0 : index
    %c0_9 = arith.constant 0 : index
    %8 = vector.load %arg3[%c0_8, %c0_9] : memref<4x128xf32, #tpu.memory_space<vmem>>, vector<1x128xf32>
    %c1_10 = arith.constant 1 : index
    %c0_11 = arith.constant 0 : index
    %9 = vector.load %arg3[%c1_10, %c0_11] : memref<4x128xf32, #tpu.memory_space<vmem>>, vector<1x128xf32>
    %c2_12 = arith.constant 2 : index
    %c0_13 = arith.constant 0 : index
    %10 = vector.load %arg3[%c2_12, %c0_13] : memref<4x128xf32, #tpu.memory_space<vmem>>, vector<1x128xf32>
    %c3_14 = arith.constant 3 : index
    %c0_15 = arith.constant 0 : index
    %11 = vector.load %arg3[%c3_14, %c0_15] : memref<4x128xf32, #tpu.memory_space<vmem>>, vector<1x128xf32>
    %c0_i32 = arith.constant 0 : i32
    %c256_i32 = arith.constant 256 : i32
    %12 = arith.muli %c0_i32, %c256_i32 : i32
    %13 = tpu.assume_multiple %12, 256 : i32
    %14 = arith.index_cast %13 : i32 to index
    %c0_16 = arith.constant 0 : index
    %15 = vector.load %arg1[%14, %c0_16] : memref<256x64xf32, #tpu.memory_space<vmem>>, vector<256x64xf32>
    %16 = arith.truncf %15 : vector<256x64xf32> to vector<256x64xbf16>
    %cst = arith.constant dense<0.000000e+00> : vector<256x128xf32>
    %17 = tpu.matmul %16, %1, %cst {dimension_numbers = #tpu.dot_dimension_numbers<[1], [0], [0], [1], [0, 0, 1, 1], [], []>} : vector<256x64xbf16>, vector<64x128xbf16>, vector<256x128xf32> -> vector<256x128xf32>
    %18 = vector.broadcast %8 : vector<1x128xf32> to vector<256x128xf32>
    %19 = arith.addf %17, %18 : vector<256x128xf32>
    %cst_17 = arith.constant 0.000000e+00 : f32
    %20 = vector.broadcast %cst_17 : f32 to vector<256x128xf32>
    %21 = arith.maximumf %19, %20 : vector<256x128xf32>
    %22 = arith.truncf %21 : vector<256x128xf32> to vector<256x128xbf16>
    %cst_18 = arith.constant dense<0.000000e+00> : vector<256x128xf32>
    %23 = tpu.matmul %22, %3, %cst_18 {dimension_numbers = #tpu.dot_dimension_numbers<[1], [0], [0], [1], [0, 0, 1, 1], [], []>} : vector<256x128xbf16>, vector<128x128xbf16>, vector<256x128xf32> -> vector<256x128xf32>
    %24 = vector.broadcast %9 : vector<1x128xf32> to vector<256x128xf32>
    %25 = arith.addf %23, %24 : vector<256x128xf32>
    %cst_19 = arith.constant 0.000000e+00 : f32
    %26 = vector.broadcast %cst_19 : f32 to vector<256x128xf32>
    %27 = arith.maximumf %25, %26 : vector<256x128xf32>
    %28 = arith.truncf %27 : vector<256x128xf32> to vector<256x128xbf16>
    %cst_20 = arith.constant dense<0.000000e+00> : vector<256x128xf32>
    %29 = tpu.matmul %28, %5, %cst_20 {dimension_numbers = #tpu.dot_dimension_numbers<[1], [0], [0], [1], [0, 0, 1, 1], [], []>} : vector<256x128xbf16>, vector<128x128xbf16>, vector<256x128xf32> -> vector<256x128xf32>
    %30 = vector.broadcast %10 : vector<1x128xf32> to vector<256x128xf32>
    %31 = arith.addf %29, %30 : vector<256x128xf32>
    %cst_21 = arith.constant 0.000000e+00 : f32
    %32 = vector.broadcast %cst_21 : f32 to vector<256x128xf32>
    %33 = arith.maximumf %31, %32 : vector<256x128xf32>
    %34 = arith.truncf %33 : vector<256x128xf32> to vector<256x128xbf16>
    %cst_22 = arith.constant dense<0.000000e+00> : vector<256x128xf32>
    %35 = tpu.matmul %34, %7, %cst_22 {dimension_numbers = #tpu.dot_dimension_numbers<[1], [0], [0], [1], [0, 0, 1, 1], [], []>} : vector<256x128xbf16>, vector<128x128xbf16>, vector<256x128xf32> -> vector<256x128xf32>
    %36 = vector.broadcast %11 : vector<1x128xf32> to vector<256x128xf32>
    %37 = arith.addf %35, %36 : vector<256x128xf32>
    %38 = vector.extract_strided_slice %37 {offsets = [0, 0], sizes = [256, 10], strides = [1, 1]} : vector<256x128xf32> to vector<256x10xf32>
    %39 = arith.index_cast %13 : i32 to index
    %c0_23 = arith.constant 0 : index
    %40 = vector.load %arg4[%39, %c0_23] : memref<256x10xf32, #tpu.memory_space<vmem>>, vector<256x10xf32>
    tpu.vector_store %arg4[%39, %c0_23], %38 {strides = array<i32>} : memref<256x10xf32, #tpu.memory_space<vmem>>, vector<256x10xf32>,
    %c1_i32 = arith.constant 1 : i32
    return
  }
  func.func @transform_0(%arg0: i32) -> (i32, i32) {
    %c0_i32 = arith.constant 0 : i32
    %c0_i32_0 = arith.constant 0 : i32
    return %arg0, %c0_i32 : i32, i32
  }
  func.func @transform_1(%arg0: i32) -> (i32, i32, i32) {
    %c0_i32 = arith.constant 0 : i32
    %c0_i32_0 = arith.constant 0 : i32
    %c0_i32_1 = arith.constant 0 : i32
    %c0_i32_2 = arith.constant 0 : i32
    return %c0_i32, %c0_i32_0, %c0_i32_1 : i32, i32, i32
  }
  func.func @transform_2(%arg0: i32) -> (i32, i32) {
    %c0_i32 = arith.constant 0 : i32
    %c0_i32_0 = arith.constant 0 : i32
    %c0_i32_1 = arith.constant 0 : i32
    return %c0_i32, %c0_i32_0 : i32, i32
  }
  func.func @transform_3(%arg0: i32) -> (i32, i32) {
    %c0_i32 = arith.constant 0 : i32
    %c0_i32_0 = arith.constant 0 : i32
    return %arg0, %c0_i32 : i32, i32
  }
}

</mosaic_0001>

<llo_original>
// kernel: tpu_custom_call.1
$region0: #{tpu_custom_call.1}
  #allocation0 [shape = 'u32[]', space=smem, size = 0x4, offset = 0x4, fixed_abs, tag = 'smem constant byte address 0x4 - core index']
  #allocation1 [shape = 'u32[144,128]{1,0:T(1,128)}', space=vmem, size = 0x12000, scoped, tag = 'internal scratch']
  %s0 = inlined_call_operand.vmem [shape: f32[512,64], index: 0, kind: input, shape index: {}]
  %s1 = inlined_call_operand.vmem [shape: bf16[4,128,128], index: 1, kind: input, shape index: {}]
  %s2 = inlined_call_operand.vmem [shape: f32[4,128], index: 2, kind: input, shape index: {}]
  %s3 = inlined_call_operand.vmem [shape: f32[512,10], index: 3, kind: output, shape index: {}]
  %s4 = sld [smem:[#allocation0]]
  $region45: #{tpu_custom_call.1} parent=0
    _
  %s6 = ssub.s32 1, %s4
  %s7 = scalar_select 0, %s6, %s4
  loop: start=0, step=1, limit=4
  $region2: #{tpu_custom_call.1} parent=0 // loop_pre_header
    _
  $region3: #{tpu_custom_call.1} parent=0 // loop_header
    %s9 = sphi 0, %s13
    %p10 = scmp.ge.s32.totalorder %s9, 4
    %s19 = sphi 0, %s21
    %s22 = sphi 0, %s19
    %s23 = sphi 0, %s22
    %s39 = sphi 0, %s23
    %s43 = sphi 0, %s43
    %s45 = sphi 0, %s43
    %s46 = sphi 0, %s45
    %s60 = sphi 0, %s46
    %s64 = sphi 0, %s64
    %s66 = sphi 0, %s64
    %s67 = sphi 0, %s66
    %s81 = sphi 0, %s67
    %s87 = sphi 0, %s89
    %s90 = sphi 0, %s87
    %s91 = sphi 0, %s90
    %s107 = sphi 0, %s91
  $region4: #{tpu_custom_call.1} parent=0 // loop_header_branch
    %12 = sbr.rel (%p10) target = $region8
  $region5: #{tpu_custom_call.1} parent=0 // loop_body
    %s14 = ssub.s32 %s9, 1
    %s15 = ssub.s32 %s9, 2
    %s16 = sadd.s32 %s9, 1
    %s17 = ssub.s32 %s9, %s16
    %p18 = scmp.eq.s32.totalorder %s17, 0
    %s20 = sadd.s32 %s19, 1
    %s21 = scalar_select %p18, %s19, %s20
    %p24 = pneg %p18
    %p25 = scmp.eq.s32.totalorder %s9, 1
    %p26 = por %p24, %p25
    %p27 = scmp.ne.s32.totalorder %s19, %s22
    %p28 = scmp.eq.s32.totalorder %s9, 0
    %p29 = por %p27, %p28
    %p30 = scmp.ne.s32.totalorder %s19, %s22
    %p31 = scmp.eq.s32.totalorder %s14, 1
    %p32 = por %p30, %p31
    %p33 = scmp.ne.s32.totalorder %s22, %s23
    %p34 = scmp.eq.s32.totalorder %s14, 0
    %p35 = por %p33, %p34
    %p36 = scmp.ne.s32.totalorder %s22, %s23
    %p37 = scmp.eq.s32.totalorder %s15, 1
    %p38 = por %p36, %p37
    %p40 = scmp.ne.s32.totalorder %s23, %s39
    %p41 = scmp.eq.s32.totalorder %s15, 0
    %p42 = por %p40, %p41
    %s44 = sadd.s32 %s43, 1
    %p47 = scmp.eq.s32.totalorder %s9, 1
    %p48 = scmp.ne.s32.totalorder %s43, %s45
    %p49 = scmp.eq.s32.totalorder %s9, 0
    %p50 = por %p48, %p49
    %p51 = scmp.ne.s32.totalorder %s43, %s45
    %p52 = scmp.eq.s32.totalorder %s14, 1
    %p53 = por %p51, %p52
    %p54 = scmp.ne.s32.totalorder %s45, %s46
    %p55 = scmp.eq.s32.totalorder %s14, 0
    %p56 = por %p54, %p55
    %p57 = scmp.ne.s32.totalorder %s45, %s46
    %p58 = scmp.eq.s32.totalorder %s15, 1
    %p59 = por %p57, %p58
    %p61 = scmp.ne.s32.totalorder %s46, %s60
    %p62 = scmp.eq.s32.totalorder %s15, 0
    %p63 = por %p61, %p62
    %s65 = sadd.s32 %s64, 1
    %p68 = scmp.eq.s32.totalorder %s9, 1
    %p69 = scmp.ne.s32.totalorder %s64, %s66
    %p70 = scmp.eq.s32.totalorder %s9, 0
    %p71 = por %p69, %p70
    %p72 = scmp.ne.s32.totalorder %s64, %s66
    %p73 = scmp.eq.s32.totalorder %s14, 1
    %p74 = por %p72, %p73
    %p75 = scmp.ne.s32.totalorder %s66, %s67
    %p76 = scmp.eq.s32.totalorder %s14, 0
    %p77 = por %p75, %p76
    %p78 = scmp.ne.s32.totalorder %s66, %s67
    %p79 = scmp.eq.s32.totalorder %s15, 1
    %p80 = por %p78, %p79
    %p82 = scmp.ne.s32.totalorder %s67, %s81
    %p83 = scmp.eq.s32.totalorder %s15, 0
    %p84 = por %p82, %p83
    %s85 = ssub.s32 %s9, %s16
    %p86 = scmp.eq.s32.totalorder %s85, 0
    %s88 = sadd.s32 %s87, 1
    %s89 = scalar_select %p86, %s87, %s88
    %p92 = pneg %p86
    %p93 = scmp.eq.s32.totalorder %s9, 1
    %p94 = por %p92, %p93
    %p95 = scmp.ne.s32.totalorder %s87, %s90
    %p96 = scmp.eq.s32.totalorder %s9, 0
    %p97 = por %p95, %p96
    %p98 = scmp.ne.s32.totalorder %s87, %s90
    %p99 = scmp.eq.s32.totalorder %s14, 1
    %p100 = por %p98, %p99
    %p101 = scmp.ne.s32.totalorder %s90, %s91
    %p102 = scmp.eq.s32.totalorder %s14, 0
    %p103 = por %p101, %p102
    %p104 = scmp.ne.s32.totalorder %s90, %s91
    %p105 = scmp.eq.s32.totalorder %s15, 1
    %p106 = por %p104, %p105
    %p108 = scmp.ne.s32.totalorder %s91, %s107
    %p109 = scmp.eq.s32.totalorder %s15, 0
    %p110 = por %p108, %p109
    %p111 = scmp.le.s32.totalorder 1, %s9
    %p112 = scmp.lt.s32.totalorder %s9, 3
    %p113 = pnand %p111, %p112
    %p114 = pneg %p113
    // Predicated region
    $region9: #{tpu_custom_call.1} parent=5 // pred_check
      _
    $region10: #{tpu_custom_call.1} parent=5 // pred_check_branch
      %116 = sbr.rel (%p113) target = $region12
    $region11: #{tpu_custom_call.1} parent=5 // pred_region
      %s117 = ssub.s32 %s9, 1
      // Predicated region
      $region13: #{tpu_custom_call.1} parent=11 // pred_check
        %p118 = pneg %p56
      $region14: #{tpu_custom_call.1} parent=11 // pred_check_branch
        %120 = sbr.rel (%p118) target = $region16
      $region15: #{tpu_custom_call.1} parent=11 // pred_region
        _
      $region16: #{tpu_custom_call.1} parent=11 // pred_fallthru
        _
      // Predicated region
      $region17: #{tpu_custom_call.1} parent=11 // pred_check
        %p121 = pneg %p77
      $region18: #{tpu_custom_call.1} parent=11 // pred_check_branch
        %123 = sbr.rel (%p121) target = $region20
      $region19: #{tpu_custom_call.1} parent=11 // pred_region
        _
      $region20: #{tpu_custom_call.1} parent=11 // pred_fallthru
        _
    $region12: #{tpu_custom_call.1} parent=5 // pred_fallthru
      _
    %p124 = scmp.lt.s32.totalorder %s9, 2
    // Predicated region
    $region21: #{tpu_custom_call.1} parent=5 // pred_check
      %p125 = pneg %p124
    $region22: #{tpu_custom_call.1} parent=5 // pred_check_branch
      %127 = sbr.rel (%p125) target = $region24
    $region23: #{tpu_custom_call.1} parent=5 // pred_region
      // Predicated region
      $region25: #{tpu_custom_call.1} parent=23 // pred_check
        %p128 = pneg %p29
      $region26: #{tpu_custom_call.1} parent=23 // pred_check_branch
        %130 = sbr.rel (%p128) target = $region28
      $region27: #{tpu_custom_call.1} parent=23 // pred_region
        %s131 = smul.u32 32, %s9
        %p132 = scmp.lt.s32.totalorder %s131, 63
        %s133 = scalar_select %p132, %s131, 63
        %s134 = smul.addr %s133, 8
        %s135 = scalar_lea.vmem %s0, %s134
        %s136 = smul.u32 32, %s9
      $region28: #{tpu_custom_call.1} parent=23 // pred_fallthru
        _
    $region24: #{tpu_custom_call.1} parent=5 // pred_fallthru
      _
    %p137 = scmp.le.s32.totalorder 1, %s9
    %p138 = scmp.lt.s32.totalorder %s9, 3
    %p139 = pnand %p137, %p138
    %p140 = pneg %p139
    // Predicated region
    $region29: #{tpu_custom_call.1} parent=5 // pred_check
      _
    $region30: #{tpu_custom_call.1} parent=5 // pred_check_branch
      %142 = sbr.rel (%p139) target = $region32
    $region31: #{tpu_custom_call.1} parent=5 // pred_region
      %s143 = ssub.s32 %s9, 1
      %s144 = smul.u32 32, %s14
      %p145 = scmp.lt.s32.totalorder %s144, 63
      %s146 = scalar_select %p145, %s144, 63
      %s147 = smul.addr %s146, 8
      %s148 = scalar_lea.vmem %s0, %s147
      %p149 = pneg %p35
      %p150 = pneg %p32
      %p151 = pneg %p56
      %p152 = pneg %p53
      %p153 = pneg %p77
      %p154 = pneg %p74
      %p155 = pneg %p103
      %p156 = pneg %p100
      %s157 = smul.u32 32, %s14
      %p158 = scmp.lt.s32.totalorder %s157, 63
      %s159 = scalar_select %p158, %s157, 63
      %s160 = smul.addr %s159, 8
      %s161 = scalar_lea.vmem %s3, %s160
      %s162 = smul.u32 32, %s14
      %p163 = scmp.lt.s32.totalorder %s162, 63
      %s164 = scalar_select %p163, %s162, 63
      %s165 = smul.addr %s164, 8
      %s166 = scalar_lea.vmem %s0, %s165
      %s167 = smul.u32 32, %s14
      %s168 = smul.u32 32, %s14
      %p169 = scmp.lt.s32.totalorder %s168, 63
      %s170 = scalar_select %p169, %s168, 63
      %s171 = smul.addr %s170, 8
      %s172 = scalar_lea.vmem %s3, %s171
      %s173 = smul.u32 32, %s14
      %v175 = vld [vmem:[%s1] sm:$0xf]
      %v176 = vld [vmem:[%s1 + $0x4] sm:$0xf]
      %v177 = vld [vmem:[%s1 + $0x8] sm:$0xf]
      %v178 = vld [vmem:[%s1 + $0xc] sm:$0xf]
      %v179 = vld [vmem:[%s1 + $0x10] sm:$0xf]
      %v180 = vld [vmem:[%s1 + $0x14] sm:$0xf]
      %v181 = vld [vmem:[%s1 + $0x18] sm:$0xf]
      %v182 = vld [vmem:[%s1 + $0x1c] sm:$0xf]
      %s183 = scalar_lea.vmem %s1, 64
      %v184 = vld [vmem:[%s183] sm:$0xf]
      %v185 = vld [vmem:[%s183 + $0x4] sm:$0xf]
      %v186 = vld [vmem:[%s183 + $0x8] sm:$0xf]
      %v187 = vld [vmem:[%s183 + $0xc] sm:$0xf]
      %v188 = vld [vmem:[%s183 + $0x10] sm:$0xf]
      %v189 = vld [vmem:[%s183 + $0x14] sm:$0xf]
      %v190 = vld [vmem:[%s183 + $0x18] sm:$0xf]
      %v191 = vld [vmem:[%s183 + $0x1c] sm:$0xf]
      %v192 = vld [vmem:[%s183 + $0x20] sm:$0xf]
      %v193 = vld [vmem:[%s183 + $0x24] sm:$0xf]
      %v194 = vld [vmem:[%s183 + $0x28] sm:$0xf]
      %v195 = vld [vmem:[%s183 + $0x2c] sm:$0xf]
      %v196 = vld [vmem:[%s183 + $0x30] sm:$0xf]
      %v197 = vld [vmem:[%s183 + $0x34] sm:$0xf]
      %v198 = vld [vmem:[%s183 + $0x38] sm:$0xf]
      %v199 = vld [vmem:[%s183 + $0x3c] sm:$0xf]
      %s200 = scalar_lea.vmem %s1, 128
      %v201 = vld [vmem:[%s200] sm:$0xf]
      %v202 = vld [vmem:[%s200 + $0x4] sm:$0xf]
      %v203 = vld [vmem:[%s200 + $0x8] sm:$0xf]
      %v204 = vld [vmem:[%s200 + $0xc] sm:$0xf]
      %v205 = vld [vmem:[%s200 + $0x10] sm:$0xf]
      %v206 = vld [vmem:[%s200 + $0x14] sm:$0xf]
      %v207 = vld [vmem:[%s200 + $0x18] sm:$0xf]
      %v208 = vld [vmem:[%s200 + $0x1c] sm:$0xf]
      %v209 = vld [vmem:[%s200 + $0x20] sm:$0xf]
      %v210 = vld [vmem:[%s200 + $0x24] sm:$0xf]
      %v211 = vld [vmem:[%s200 + $0x28] sm:$0xf]
      %v212 = vld [vmem:[%s200 + $0x2c] sm:$0xf]
      %v213 = vld [vmem:[%s200 + $0x30] sm:$0xf]
      %v214 = vld [vmem:[%s200 + $0x34] sm:$0xf]
      %v215 = vld [vmem:[%s200 + $0x38] sm:$0xf]
      %v216 = vld [vmem:[%s200 + $0x3c] sm:$0xf]
      %s217 = scalar_lea.vmem %s1, 192
      %v218 = vld [vmem:[%s217] sm:$0xf]
      %v219 = vld [vmem:[%s217 + $0x4] sm:$0xf]
      %v220 = vld [vmem:[%s217 + $0x8] sm:$0xf]
      %v221 = vld [vmem:[%s217 + $0xc] sm:$0xf]
      %v222 = vld [vmem:[%s217 + $0x10] sm:$0xf]
      %v223 = vld [vmem:[%s217 + $0x14] sm:$0xf]
      %v224 = vld [vmem:[%s217 + $0x18] sm:$0xf]
      %v225 = vld [vmem:[%s217 + $0x1c] sm:$0xf]
      %v226 = vld [vmem:[%s217 + $0x20] sm:$0xf]
      %v227 = vld [vmem:[%s217 + $0x24] sm:$0xf]
      %v228 = vld [vmem:[%s217 + $0x28] sm:$0xf]
      %v229 = vld [vmem:[%s217 + $0x2c] sm:$0xf]
      %v230 = vld [vmem:[%s217 + $0x30] sm:$0xf]
      %v231 = vld [vmem:[%s217 + $0x34] sm:$0xf]
      %v232 = vld [vmem:[%s217 + $0x38] sm:$0xf]
      %v233 = vld [vmem:[%s217 + $0x3c] sm:$0xf]
      %v234 = vld [vmem:[%s2] sm:$0x1]
      %v235 = vld [vmem:[%s2 + $0x1] sm:$0x1]
      %v236 = vld [vmem:[%s2 + $0x2] sm:$0x1]
      %v237 = vld [vmem:[%s2 + $0x3] sm:$0x1]
      %v238 = vld [vmem:[%s166] sm:$0xff]
      %v239 = vld [vmem:[%s166 + $0x8] sm:$0xff]
      %v240 = vld [vmem:[%s166 + $0x10] sm:$0xff]
      %v241 = vld [vmem:[%s166 + $0x18] sm:$0xff]
      %v242 = vld [vmem:[%s166 + $0x20] sm:$0xff]
      %v243 = vld [vmem:[%s166 + $0x28] sm:$0xff]
      %v244 = vld [vmem:[%s166 + $0x30] sm:$0xff]
      %v245 = vld [vmem:[%s166 + $0x38] sm:$0xff]
      %v246 = vld [vmem:[%s166 + $0x40] sm:$0xff]
      %v247 = vld [vmem:[%s166 + $0x48] sm:$0xff]
      %v248 = vld [vmem:[%s166 + $0x50] sm:$0xff]
      %v249 = vld [vmem:[%s166 + $0x58] sm:$0xff]
      %v250 = vld [vmem:[%s166 + $0x60] sm:$0xff]
      %v251 = vld [vmem:[%s166 + $0x68] sm:$0xff]
      %v252 = vld [vmem:[%s166 + $0x70] sm:$0xff]
      %v253 = vld [vmem:[%s166 + $0x78] sm:$0xff]
      %v254 = vld [vmem:[%s166 + $0x80] sm:$0xff]
      %v255 = vld [vmem:[%s166 + $0x88] sm:$0xff]
      %v256 = vld [vmem:[%s166 + $0x90] sm:$0xff]
      %v257 = vld [vmem:[%s166 + $0x98] sm:$0xff]
      %v258 = vld [vmem:[%s166 + $0xa0] sm:$0xff]
      %v259 = vld [vmem:[%s166 + $0xa8] sm:$0xff]
      %v260 = vld [vmem:[%s166 + $0xb0] sm:$0xff]
      %v261 = vld [vmem:[%s166 + $0xb8] sm:$0xff]
      %v262 = vld [vmem:[%s166 + $0xc0] sm:$0xff]
      %v263 = vld [vmem:[%s166 + $0xc8] sm:$0xff]
      %v264 = vld [vmem:[%s166 + $0xd0] sm:$0xff]
      %v265 = vld [vmem:[%s166 + $0xd8] sm:$0xff]
      %v266 = vld [vmem:[%s166 + $0xe0] sm:$0xff]
      %v267 = vld [vmem:[%s166 + $0xe8] sm:$0xff]
      %v268 = vld [vmem:[%s166 + $0xf0] sm:$0xff]
      %v269 = vld [vmem:[%s166 + $0xf8] sm:$0xff]
      %v270 = vpack.c.bf16 %v239, %v238
      %v271 = vpack.c.bf16 %v241, %v240
      %v272 = vpack.c.bf16 %v243, %v242
      %v273 = vpack.c.bf16 %v245, %v244
      %v274 = vpack.c.bf16 %v247, %v246
      %v275 = vpack.c.bf16 %v249, %v248
      %v276 = vpack.c.bf16 %v251, %v250
      %v277 = vpack.c.bf16 %v253, %v252
      %v278 = vpack.c.bf16 %v255, %v254
      %v279 = vpack.c.bf16 %v257, %v256
      %v280 = vpack.c.bf16 %v259, %v258
      %v281 = vpack.c.bf16 %v261, %v260
      %v282 = vpack.c.bf16 %v263, %v262
      %v283 = vpack.c.bf16 %v265, %v264
      %v284 = vpack.c.bf16 %v267, %v266
      %v285 = vpack.c.bf16 %v269, %v268
      %v286 = vlaneseq
      %v287 = vshrl.u32 %v286, 7
      %v288 = vsub.s32 0, %v287
      %v289 = vrot.slane %v234, %v288
      %v298 = vunpack.c.l.b16 %v175
      %v299 = vunpack.c.l.b16 %v176
      %v300 = vunpack.c.l.b16 %v177
      %v301 = vunpack.c.l.b16 %v178
      %v302 = vunpack.c.l.b16 %v179
      %v303 = vunpack.c.l.b16 %v180
      %v304 = vunpack.c.l.b16 %v181
      %v305 = vunpack.c.l.b16 %v182
      %v306 = vpack.c.b16 %v299, %v298
      %v307 = vpack.c.b16 %v301, %v300
      %v308 = vpack.c.b16 %v303, %v302
      %v309 = vpack.c.b16 %v305, %v304
      %vm314 = vcmask 523264
      %v316 = vsel %vm314, %v270, 0
      %v319 = vsel %vm314, %v271, 0
      %v322 = vsel %vm314, %v272, 0
      %v325 = vsel %vm314, %v273, 0
      %v328 = vsel %vm314, %v274, 0
      %v331 = vsel %vm314, %v275, 0
      %v334 = vsel %vm314, %v276, 0
      %v337 = vsel %vm314, %v277, 0
      %v340 = vsel %vm314, %v278, 0
      %v343 = vsel %vm314, %v279, 0
      %v346 = vsel %vm314, %v280, 0
      %v349 = vsel %vm314, %v281, 0
      %v352 = vsel %vm314, %v282, 0
      %v355 = vsel %vm314, %v283, 0
      %v358 = vsel %vm314, %v284, 0
      %v361 = vsel %vm314, %v285, 0
      %363 = vmatprep.subr.bf16.mxu0 0
      %364 = vmatpush1.bf16.msra.mxu0 %v306
      %365 = vmatprep.subr.bf16.mxu0 0
      %366 = vmatpush1.bf16.msra.mxu0 %v307
      %367 = vmatprep.subr.bf16.mxu0 0
      %368 = vmatpush1.bf16.msra.mxu0 %v308
      %369 = vmatprep.subr.bf16.mxu0 0
      %370 = vmatpush1.bf16.msra.mxu0 %v309
      %371 = vmatprep.subr.bf16.mxu0 0
      %372 = vmatpush1.bf16.msra.mxu0 0
      %373 = vmatprep.subr.bf16.mxu0 0
      %374 = vmatpush1.bf16.msra.mxu0 0
      %375 = vmatprep.subr.bf16.mxu0 0
      %376 = vmatpush1.bf16.msra.mxu0 0
      %377 = vmatprep.subr.bf16.mxu0 0
      %378 = vmatpush1.bf16.msra.mxu0 0
      %379 = vmatprep.subr.bf16.mxu0 0
      %380 = vmatpush1.bf16.msra.mxu0 0
      %381 = vmatprep.subr.bf16.mxu0 0
      %382 = vmatpush1.bf16.msra.mxu0 0
      %383 = vmatprep.subr.bf16.mxu0 0
      %384 = vmatpush1.bf16.msra.mxu0 0
      %385 = vmatprep.subr.bf16.mxu0 0
      %386 = vmatpush1.bf16.msra.mxu0 0
      %387 = vmatprep.subr.bf16.mxu0 0
      %388 = vmatpush1.bf16.msra.mxu0 0
      %389 = vmatprep.subr.bf16.mxu0 0
      %390 = vmatpush1.bf16.msra.mxu0 0
      %391 = vmatprep.subr.bf16.mxu0 0
      %392 = vmatpush1.bf16.msra.mxu0 0
      %393 = vmatprep.subr.bf16.mxu0 0
      %394 = vmatpush1.bf16.msra.mxu0 0
      %395 = vmatprep.mubr.bf16.mxu0 0
      %396 = vmatmul.mubr.bf16.gmra.mrb[0].mxu0 %v316
      %v397 = vpop.f32.mrb[0].mxu0
      %v398 = vadd.f32 %v289, %v397
      %v399 = vpop.f32.mrb[0].mxu0
      %v400 = vpop.f32.mrb[0].mxu0
      %v401 = vadd.f32 %v289, %v400
      %v402 = vpop.f32.mrb[0].mxu0
      %403 = vmatprep.mubr.bf16.mxu0 0
      %404 = vmatmul.mubr.bf16.gmra.mrb[0].mxu0 %v319
      %v405 = vpop.f32.mrb[0].mxu0
      %v406 = vadd.f32 %v289, %v405
      %v407 = vpop.f32.mrb[0].mxu0
      %v408 = vpop.f32.mrb[0].mxu0
      %v409 = vadd.f32 %v289, %v408
      %v410 = vpop.f32.mrb[0].mxu0
      %411 = vmatprep.mubr.bf16.mxu0 0
      %412 = vmatmul.mubr.bf16.gmra.mrb[0].mxu0 %v322
      %v413 = vpop.f32.mrb[0].mxu0
      %v414 = vadd.f32 %v289, %v413
      %v415 = vpop.f32.mrb[0].mxu0
      %v416 = vpop.f32.mrb[0].mxu0
      %v417 = vadd.f32 %v289, %v416
      %v418 = vpop.f32.mrb[0].mxu0
      %419 = vmatprep.mubr.bf16.mxu0 0
      %420 = vmatmul.mubr.bf16.gmra.mrb[0].mxu0 %v325
      %v421 = vpop.f32.mrb[0].mxu0
      %v422 = vadd.f32 %v289, %v421
      %v423 = vpop.f32.mrb[0].mxu0
      %v424 = vpop.f32.mrb[0].mxu0
      %v425 = vadd.f32 %v289, %v424
      %v426 = vpop.f32.mrb[0].mxu0
      %427 = vmatprep.mubr.bf16.mxu0 0
      %428 = vmatmul.mubr.bf16.gmra.mrb[0].mxu0 %v328
      %v429 = vpop.f32.mrb[0].mxu0
      %v430 = vadd.f32 %v289, %v429
      %v431 = vpop.f32.mrb[0].mxu0
      %v432 = vpop.f32.mrb[0].mxu0
      %v433 = vadd.f32 %v289, %v432
      %v434 = vpop.f32.mrb[0].mxu0
      %435 = vmatprep.mubr.bf16.mxu0 0
      %436 = vmatmul.mubr.bf16.gmra.mrb[0].mxu0 %v331
      %v437 = vpop.f32.mrb[0].mxu0
      %v438 = vadd.f32 %v289, %v437
      %v439 = vpop.f32.mrb[0].mxu0
      %v440 = vpop.f32.mrb[0].mxu0
      %v441 = vadd.f32 %v289, %v440
      %v442 = vpop.f32.mrb[0].mxu0
      %443 = vmatprep.mubr.bf16.mxu0 0
      %444 = vmatmul.mubr.bf16.gmra.mrb[0].mxu0 %v334
      %v445 = vpop.f32.mrb[0].mxu0
      %v446 = vadd.f32 %v289, %v445
      %v447 = vpop.f32.mrb[0].mxu0
      %v448 = vpop.f32.mrb[0].mxu0
      %v449 = vadd.f32 %v289, %v448
      %v450 = vpop.f32.mrb[0].mxu0
      %451 = vmatprep.mubr.bf16.mxu0 0
      %452 = vmatmul.mubr.bf16.gmra.mrb[0].mxu0 %v337
      %v453 = vpop.f32.mrb[0].mxu0
      %v454 = vadd.f32 %v289, %v453
      %v455 = vpop.f32.mrb[0].mxu0
      %v456 = vpop.f32.mrb[0].mxu0
      %v457 = vadd.f32 %v289, %v456
      %v458 = vpop.f32.mrb[0].mxu0
      %459 = vmatprep.mubr.bf16.mxu0 0
      %460 = vmatmul.mubr.bf16.gmra.mrb[0].mxu0 %v340
      %v461 = vpop.f32.mrb[0].mxu0
      %v462 = vadd.f32 %v289, %v461
      %v463 = vpop.f32.mrb[0].mxu0
      %v464 = vpop.f32.mrb[0].mxu0
      %v465 = vadd.f32 %v289, %v464
      %v466 = vpop.f32.mrb[0].mxu0
      %467 = vmatprep.mubr.bf16.mxu0 0
      %468 = vmatmul.mubr.bf16.gmra.mrb[0].mxu0 %v343
      %v469 = vpop.f32.mrb[0].mxu0
      %v470 = vadd.f32 %v289, %v469
      %v471 = vpop.f32.mrb[0].mxu0
      %v472 = vpop.f32.mrb[0].mxu0
      %v473 = vadd.f32 %v289, %v472
      %v474 = vpop.f32.mrb[0].mxu0
      %475 = vmatprep.mubr.bf16.mxu0 0
      %476 = vmatmul.mubr.bf16.gmra.mrb[0].mxu0 %v346
      %v477 = vpop.f32.mrb[0].mxu0
      %v478 = vadd.f32 %v289, %v477
      %v479 = vpop.f32.mrb[0].mxu0
      %v480 = vpop.f32.mrb[0].mxu0
      %v481 = vadd.f32 %v289, %v480
      %v482 = vpop.f32.mrb[0].mxu0
      %483 = vmatprep.mubr.bf16.mxu0 0
      %484 = vmatmul.mubr.bf16.gmra.mrb[0].mxu0 %v349
      %v485 = vpop.f32.mrb[0].mxu0
      %v486 = vadd.f32 %v289, %v485
      %v487 = vpop.f32.mrb[0].mxu0
      %v488 = vpop.f32.mrb[0].mxu0
      %v489 = vadd.f32 %v289, %v488
      %v490 = vpop.f32.mrb[0].mxu0
      %491 = vmatprep.mubr.bf16.mxu0 0
      %492 = vmatmul.mubr.bf16.gmra.mrb[0].mxu0 %v352
      %v493 = vpop.f32.mrb[0].mxu0
      %v494 = vadd.f32 %v289, %v493
      %v495 = vpop.f32.mrb[0].mxu0
      %v496 = vpop.f32.mrb[0].mxu0
      %v497 = vadd.f32 %v289, %v496
      %v498 = vpop.f32.mrb[0].mxu0
      %499 = vmatprep.mubr.bf16.mxu0 0
      %500 = vmatmul.mubr.bf16.gmra.mrb[0].mxu0 %v355
      %v501 = vpop.f32.mrb[0].mxu0
      %v502 = vadd.f32 %v289, %v501
      %v503 = vpop.f32.mrb[0].mxu0
      %v504 = vpop.f32.mrb[0].mxu0
      %v505 = vadd.f32 %v289, %v504
      %v506 = vpop.f32.mrb[0].mxu0
      %507 = vmatprep.mubr.bf16.mxu0 0
      %508 = vmatmul.mubr.bf16.gmra.mrb[0].mxu0 %v358
      %v509 = vpop.f32.mrb[0].mxu0
      %v510 = vadd.f32 %v289, %v509
      %v511 = vpop.f32.mrb[0].mxu0
      %v512 = vpop.f32.mrb[0].mxu0
      %v513 = vadd.f32 %v289, %v512
      %v514 = vpop.f32.mrb[0].mxu0
      %515 = vmatprep.mubr.bf16.mxu0 0
      %516 = vmatmul.mubr.bf16.gmra.mrb[0].mxu0 %v361
      %v517 = vpop.f32.mrb[0].mxu0
      %v518 = vadd.f32 %v289, %v517
      %v519 = vpop.f32.mrb[0].mxu0
      %v520 = vpop.f32.mrb[0].mxu0
      %v521 = vadd.f32 %v289, %v520
      %v522 = vpop.f32.mrb[0].mxu0
      %523 = vdwg.mxu0
      %v524 = vmax.f32 %v398, 0.0
      %v525 = vmax.f32 %v401, 0.0
      %v526 = vmax.f32 %v406, 0.0
      %v527 = vmax.f32 %v409, 0.0
      %v528 = vmax.f32 %v414, 0.0
      %v529 = vmax.f32 %v417, 0.0
      %v530 = vmax.f32 %v422, 0.0
      %v531 = vmax.f32 %v425, 0.0
      %v532 = vmax.f32 %v430, 0.0
      %v533 = vmax.f32 %v433, 0.0
      %v534 = vmax.f32 %v438, 0.0
      %v535 = vmax.f32 %v441, 0.0
      %v536 = vmax.f32 %v446, 0.0
      %v537 = vmax.f32 %v449, 0.0
      %v538 = vmax.f32 %v454, 0.0
      %v539 = vmax.f32 %v457, 0.0
      %v540 = vmax.f32 %v462, 0.0
      %v541 = vmax.f32 %v465, 0.0
      %v542 = vmax.f32 %v470, 0.0
      %v543 = vmax.f32 %v473, 0.0
      %v544 = vmax.f32 %v478, 0.0
      %v545 = vmax.f32 %v481, 0.0
      %v546 = vmax.f32 %v486, 0.0
      %v547 = vmax.f32 %v489, 0.0
      %v548 = vmax.f32 %v494, 0.0
      %v549 = vmax.f32 %v497, 0.0
      %v550 = vmax.f32 %v502, 0.0
      %v551 = vmax.f32 %v505, 0.0
      %v552 = vmax.f32 %v510, 0.0
      %v553 = vmax.f32 %v513, 0.0
      %v554 = vmax.f32 %v518, 0.0
      %v555 = vmax.f32 %v521, 0.0
      %v556 = vpack.c.bf16 %v525, %v524
      %v557 = vpack.c.bf16 %v527, %v526
      %v558 = vpack.c.bf16 %v529, %v528
      %v559 = vpack.c.bf16 %v531, %v530
      %v560 = vpack.c.bf16 %v533, %v532
      %v561 = vpack.c.bf16 %v535, %v534
      %v562 = vpack.c.bf16 %v537, %v536
      %v563 = vpack.c.bf16 %v539, %v538
      %v564 = vpack.c.bf16 %v541, %v540
      %v565 = vpack.c.bf16 %v543, %v542
      %v566 = vpack.c.bf16 %v545, %v544
      %v567 = vpack.c.bf16 %v547, %v546
      %v568 = vpack.c.bf16 %v549, %v548
      %v569 = vpack.c.bf16 %v551, %v550
      %v570 = vpack.c.bf16 %v553, %v552
      %v571 = vpack.c.bf16 %v555, %v554
      %v572 = vlaneseq
      %v573 = vshrl.u32 %v572, 7
      %v574 = vsub.s32 0, %v573
      %v575 = vrot.slane %v235, %v574
      %v592 = vunpack.c.l.b16 %v184
      %v593 = vunpack.c.l.b16 %v185
      %v594 = vunpack.c.l.b16 %v186
      %v595 = vunpack.c.l.b16 %v187
      %v596 = vunpack.c.l.b16 %v188
      %v597 = vunpack.c.l.b16 %v189
      %v598 = vunpack.c.l.b16 %v190
      %v599 = vunpack.c.l.b16 %v191
      %v600 = vunpack.c.l.b16 %v192
      %v601 = vunpack.c.l.b16 %v193
      %v602 = vunpack.c.l.b16 %v194
      %v603 = vunpack.c.l.b16 %v195
      %v604 = vunpack.c.l.b16 %v196
      %v605 = vunpack.c.l.b16 %v197
      %v606 = vunpack.c.l.b16 %v198
      %v607 = vunpack.c.l.b16 %v199
      %v608 = vpack.c.b16 %v593, %v592
      %v609 = vpack.c.b16 %v595, %v594
      %v610 = vpack.c.b16 %v597, %v596
      %v611 = vpack.c.b16 %v599, %v598
      %v612 = vpack.c.b16 %v601, %v600
      %v613 = vpack.c.b16 %v603, %v602
      %v614 = vpack.c.b16 %v605, %v604
      %v615 = vpack.c.b16 %v607, %v606
      %624 = vmatprep.subr.bf16.mxu0 0
      %625 = vmatpush1.bf16.msra.mxu0 %v608
      %626 = vmatprep.subr.bf16.mxu0 0
      %627 = vmatpush1.bf16.msra.mxu0 %v609
      %628 = vmatprep.subr.bf16.mxu0 0
      %629 = vmatpush1.bf16.msra.mxu0 %v610
      %630 = vmatprep.subr.bf16.mxu0 0
      %631 = vmatpush1.bf16.msra.mxu0 %v611
      %632 = vmatprep.subr.bf16.mxu0 0
      %633 = vmatpush1.bf16.msra.mxu0 %v612
      %634 = vmatprep.subr.bf16.mxu0 0
      %635 = vmatpush1.bf16.msra.mxu0 %v613
      %636 = vmatprep.subr.bf16.mxu0 0
      %637 = vmatpush1.bf16.msra.mxu0 %v614
      %638 = vmatprep.subr.bf16.mxu0 0
      %639 = vmatpush1.bf16.msra.mxu0 %v615
      %640 = vmatprep.subr.bf16.mxu0 0
      %641 = vmatpush1.bf16.msra.mxu0 0
      %642 = vmatprep.subr.bf16.mxu0 0
      %643 = vmatpush1.bf16.msra.mxu0 0
      %644 = vmatprep.subr.bf16.mxu0 0
      %645 = vmatpush1.bf16.msra.mxu0 0
      %646 = vmatprep.subr.bf16.mxu0 0
      %647 = vmatpush1.bf16.msra.mxu0 0
      %648 = vmatprep.subr.bf16.mxu0 0
      %649 = vmatpush1.bf16.msra.mxu0 0
      %650 = vmatprep.subr.bf16.mxu0 0
      %651 = vmatpush1.bf16.msra.mxu0 0
      %652 = vmatprep.subr.bf16.mxu0 0
      %653 = vmatpush1.bf16.msra.mxu0 0
      %654 = vmatprep.subr.bf16.mxu0 0
      %655 = vmatpush1.bf16.msra.mxu0 0
      %656 = vmatprep.mubr.bf16.mxu0 0
      %657 = vmatmul.mubr.bf16.gmra.mrb[0].mxu0 %v556
      %v658 = vpop.f32.mrb[0].mxu0
      %v659 = vadd.f32 %v575, %v658
      %v660 = vpop.f32.mrb[0].mxu0
      %v661 = vpop.f32.mrb[0].mxu0
      %v662 = vadd.f32 %v575, %v661
      %v663 = vpop.f32.mrb[0].mxu0
      %664 = vmatprep.mubr.bf16.mxu0 0
      %665 = vmatmul.mubr.bf16.gmra.mrb[0].mxu0 %v557
      %v666 = vpop.f32.mrb[0].mxu0
      %v667 = vadd.f32 %v575, %v666
      %v668 = vpop.f32.mrb[0].mxu0
      %v669 = vpop.f32.mrb[0].mxu0
      %v670 = vadd.f32 %v575, %v669
      %v671 = vpop.f32.mrb[0].mxu0
      %672 = vmatprep.mubr.bf16.mxu0 0
      %673 = vmatmul.mubr.bf16.gmra.mrb[0].mxu0 %v558
      %v674 = vpop.f32.mrb[0].mxu0
      %v675 = vadd.f32 %v575, %v674
      %v676 = vpop.f32.mrb[0].mxu0
      %v677 = vpop.f32.mrb[0].mxu0
      %v678 = vadd.f32 %v575, %v677
      %v679 = vpop.f32.mrb[0].mxu0
      %680 = vmatprep.mubr.bf16.mxu0 0
      %681 = vmatmul.mubr.bf16.gmra.mrb[0].mxu0 %v559
      %v682 = vpop.f32.mrb[0].mxu0
      %v683 = vadd.f32 %v575, %v682
      %v684 = vpop.f32.mrb[0].mxu0
      %v685 = vpop.f32.mrb[0].mxu0
      %v686 = vadd.f32 %v575, %v685
      %v687 = vpop.f32.mrb[0].mxu0
      %688 = vmatprep.mubr.bf16.mxu0 0
      %689 = vmatmul.mubr.bf16.gmra.mrb[0].mxu0 %v560
      %v690 = vpop.f32.mrb[0].mxu0
      %v691 = vadd.f32 %v575, %v690
      %v692 = vpop.f32.mrb[0].mxu0
      %v693 = vpop.f32.mrb[0].mxu0
      %v694 = vadd.f32 %v575, %v693
      %v695 = vpop.f32.mrb[0].mxu0
      %696 = vmatprep.mubr.bf16.mxu0 0
      %697 = vmatmul.mubr.bf16.gmra.mrb[0].mxu0 %v561
      %v698 = vpop.f32.mrb[0].mxu0
      %v699 = vadd.f32 %v575, %v698
      %v700 = vpop.f32.mrb[0].mxu0
      %v701 = vpop.f32.mrb[0].mxu0
      %v702 = vadd.f32 %v575, %v701
      %v703 = vpop.f32.mrb[0].mxu0
      %704 = vmatprep.mubr.bf16.mxu0 0
      %705 = vmatmul.mubr.bf16.gmra.mrb[0].mxu0 %v562
      %v706 = vpop.f32.mrb[0].mxu0
      %v707 = vadd.f32 %v575, %v706
      %v708 = vpop.f32.mrb[0].mxu0
      %v709 = vpop.f32.mrb[0].mxu0
      %v710 = vadd.f32 %v575, %v709
      %v711 = vpop.f32.mrb[0].mxu0
      %712 = vmatprep.mubr.bf16.mxu0 0
      %713 = vmatmul.mubr.bf16.gmra.mrb[0].mxu0 %v563
      %v714 = vpop.f32.mrb[0].mxu0
      %v715 = vadd.f32 %v575, %v714
      %v716 = vpop.f32.mrb[0].mxu0
      %v717 = vpop.f32.mrb[0].mxu0
      %v718 = vadd.f32 %v575, %v717
      %v719 = vpop.f32.mrb[0].mxu0
      %720 = vmatprep.mubr.bf16.mxu0 0
      %721 = vmatmul.mubr.bf16.gmra.mrb[0].mxu0 %v564
      %v722 = vpop.f32.mrb[0].mxu0
      %v723 = vadd.f32 %v575, %v722
      %v724 = vpop.f32.mrb[0].mxu0
      %v725 = vpop.f32.mrb[0].mxu0
      %v726 = vadd.f32 %v575, %v725
      %v727 = vpop.f32.mrb[0].mxu0
      %728 = vmatprep.mubr.bf16.mxu0 0
      %729 = vmatmul.mubr.bf16.gmra.mrb[0].mxu0 %v565
      %v730 = vpop.f32.mrb[0].mxu0
      %v731 = vadd.f32 %v575, %v730
      %v732 = vpop.f32.mrb[0].mxu0
      %v733 = vpop.f32.mrb[0].mxu0
      %v734 = vadd.f32 %v575, %v733
      %v735 = vpop.f32.mrb[0].mxu0
      %736 = vmatprep.mubr.bf16.mxu0 0
      %737 = vmatmul.mubr.bf16.gmra.mrb[0].mxu0 %v566
      %v738 = vpop.f32.mrb[0].mxu0
      %v739 = vadd.f32 %v575, %v738
      %v740 = vpop.f32.mrb[0].mxu0
      %v741 = vpop.f32.mrb[0].mxu0
      %v742 = vadd.f32 %v575, %v741
      %v743 = vpop.f32.mrb[0].mxu0
      %744 = vmatprep.mubr.bf16.mxu0 0
      %745 = vmatmul.mubr.bf16.gmra.mrb[0].mxu0 %v567
      %v746 = vpop.f32.mrb[0].mxu0
      %v747 = vadd.f32 %v575, %v746
      %v748 = vpop.f32.mrb[0].mxu0
      %v749 = vpop.f32.mrb[0].mxu0
      %v750 = vadd.f32 %v575, %v749
      %v751 = vpop.f32.mrb[0].mxu0
      %752 = vmatprep.mubr.bf16.mxu0 0
      %753 = vmatmul.mubr.bf16.gmra.mrb[0].mxu0 %v568
      %v754 = vpop.f32.mrb[0].mxu0
      %v755 = vadd.f32 %v575, %v754
      %v756 = vpop.f32.mrb[0].mxu0
      %v757 = vpop.f32.mrb[0].mxu0
      %v758 = vadd.f32 %v575, %v757
      %v759 = vpop.f32.mrb[0].mxu0
      %760 = vmatprep.mubr.bf16.mxu0 0
      %761 = vmatmul.mubr.bf16.gmra.mrb[0].mxu0 %v569
      %v762 = vpop.f32.mrb[0].mxu0
      %v763 = vadd.f32 %v575, %v762
      %v764 = vpop.f32.mrb[0].mxu0
      %v765 = vpop.f32.mrb[0].mxu0
      %v766 = vadd.f32 %v575, %v765
      %v767 = vpop.f32.mrb[0].mxu0
      %768 = vmatprep.mubr.bf16.mxu0 0
      %769 = vmatmul.mubr.bf16.gmra.mrb[0].mxu0 %v570
      %v770 = vpop.f32.mrb[0].mxu0
      %v771 = vadd.f32 %v575, %v770
      %v772 = vpop.f32.mrb[0].mxu0
      %v773 = vpop.f32.mrb[0].mxu0
      %v774 = vadd.f32 %v575, %v773
      %v775 = vpop.f32.mrb[0].mxu0
      %776 = vmatprep.mubr.bf16.mxu0 0
      %777 = vmatmul.mubr.bf16.gmra.mrb[0].mxu0 %v571
      %v778 = vpop.f32.mrb[0].mxu0
      %v779 = vadd.f32 %v575, %v778
      %v780 = vpop.f32.mrb[0].mxu0
      %v781 = vpop.f32.mrb[0].mxu0
      %v782 = vadd.f32 %v575, %v781
      %v783 = vpop.f32.mrb[0].mxu0
      %784 = vdwg.mxu0
      %v785 = vmax.f32 %v659, 0.0
      %v786 = vmax.f32 %v662, 0.0
      %v787 = vmax.f32 %v667, 0.0
      %v788 = vmax.f32 %v670, 0.0
      %v789 = vmax.f32 %v675, 0.0
      %v790 = vmax.f32 %v678, 0.0
      %v791 = vmax.f32 %v683, 0.0
      %v792 = vmax.f32 %v686, 0.0
      %v793 = vmax.f32 %v691, 0.0
      %v794 = vmax.f32 %v694, 0.0
      %v795 = vmax.f32 %v699, 0.0
      %v796 = vmax.f32 %v702, 0.0
      %v797 = vmax.f32 %v707, 0.0
      %v798 = vmax.f32 %v710, 0.0
      %v799 = vmax.f32 %v715, 0.0
      %v800 = vmax.f32 %v718, 0.0
      %v801 = vmax.f32 %v723, 0.0
      %v802 = vmax.f32 %v726, 0.0
      %v803 = vmax.f32 %v731, 0.0
      %v804 = vmax.f32 %v734, 0.0
      %v805 = vmax.f32 %v739, 0.0
      %v806 = vmax.f32 %v742, 0.0
      %v807 = vmax.f32 %v747, 0.0
      %v808 = vmax.f32 %v750, 0.0
      %v809 = vmax.f32 %v755, 0.0
      %v810 = vmax.f32 %v758, 0.0
      %v811 = vmax.f32 %v763, 0.0
      %v812 = vmax.f32 %v766, 0.0
      %v813 = vmax.f32 %v771, 0.0
      %v814 = vmax.f32 %v774, 0.0
      %v815 = vmax.f32 %v779, 0.0
      %v816 = vmax.f32 %v782, 0.0
      %v817 = vpack.c.bf16 %v786, %v785
      %v818 = vpack.c.bf16 %v788, %v787
      %v819 = vpack.c.bf16 %v790, %v789
      %v820 = vpack.c.bf16 %v792, %v791
      %v821 = vpack.c.bf16 %v794, %v793
      %v822 = vpack.c.bf16 %v796, %v795
      %v823 = vpack.c.bf16 %v798, %v797
      %v824 = vpack.c.bf16 %v800, %v799
      %v825 = vpack.c.bf16 %v802, %v801
      %v826 = vpack.c.bf16 %v804, %v803
      %v827 = vpack.c.bf16 %v806, %v805
      %v828 = vpack.c.bf16 %v808, %v807
      %v829 = vpack.c.bf16 %v810, %v809
      %v830 = vpack.c.bf16 %v812, %v811
      %v831 = vpack.c.bf16 %v814, %v813
      %v832 = vpack.c.bf16 %v816, %v815
      %v833 = vlaneseq
      %v834 = vshrl.u32 %v833, 7
      %v835 = vsub.s32 0, %v834
      %v836 = vrot.slane %v236, %v835
      %v853 = vunpack.c.l.b16 %v201
      %v854 = vunpack.c.l.b16 %v202
      %v855 = vunpack.c.l.b16 %v203
      %v856 = vunpack.c.l.b16 %v204
      %v857 = vunpack.c.l.b16 %v205
      %v858 = vunpack.c.l.b16 %v206
      %v859 = vunpack.c.l.b16 %v207
      %v860 = vunpack.c.l.b16 %v208
      %v861 = vunpack.c.l.b16 %v209
      %v862 = vunpack.c.l.b16 %v210
      %v863 = vunpack.c.l.b16 %v211
      %v864 = vunpack.c.l.b16 %v212
      %v865 = vunpack.c.l.b16 %v213
      %v866 = vunpack.c.l.b16 %v214
      %v867 = vunpack.c.l.b16 %v215
      %v868 = vunpack.c.l.b16 %v216
      %v869 = vpack.c.b16 %v854, %v853
      %v870 = vpack.c.b16 %v856, %v855
      %v871 = vpack.c.b16 %v858, %v857
      %v872 = vpack.c.b16 %v860, %v859
      %v873 = vpack.c.b16 %v862, %v861
      %v874 = vpack.c.b16 %v864, %v863
      %v875 = vpack.c.b16 %v866, %v865
      %v876 = vpack.c.b16 %v868, %v867
      %885 = vmatprep.subr.bf16.mxu0 0
      %886 = vmatpush1.bf16.msra.mxu0 %v869
      %887 = vmatprep.subr.bf16.mxu0 0
      %888 = vmatpush1.bf16.msra.mxu0 %v870
      %889 = vmatprep.subr.bf16.mxu0 0
      %890 = vmatpush1.bf16.msra.mxu0 %v871
      %891 = vmatprep.subr.bf16.mxu0 0
      %892 = vmatpush1.bf16.msra.mxu0 %v872
      %893 = vmatprep.subr.bf16.mxu0 0
      %894 = vmatpush1.bf16.msra.mxu0 %v873
      %895 = vmatprep.subr.bf16.mxu0 0
      %896 = vmatpush1.bf16.msra.mxu0 %v874
      %897 = vmatprep.subr.bf16.mxu0 0
      %898 = vmatpush1.bf16.msra.mxu0 %v875
      %899 = vmatprep.subr.bf16.mxu0 0
      %900 = vmatpush1.bf16.msra.mxu0 %v876
      %901 = vmatprep.subr.bf16.mxu0 0
      %902 = vmatpush1.bf16.msra.mxu0 0
      %903 = vmatprep.subr.bf16.mxu0 0
      %904 = vmatpush1.bf16.msra.mxu0 0
      %905 = vmatprep.subr.bf16.mxu0 0
      %906 = vmatpush1.bf16.msra.mxu0 0
      %907 = vmatprep.subr.bf16.mxu0 0
      %908 = vmatpush1.bf16.msra.mxu0 0
      %909 = vmatprep.subr.bf16.mxu0 0
      %910 = vmatpush1.bf16.msra.mxu0 0
      %911 = vmatprep.subr.bf16.mxu0 0
      %912 = vmatpush1.bf16.msra.mxu0 0
      %913 = vmatprep.subr.bf16.mxu0 0
      %914 = vmatpush1.bf16.msra.mxu0 0
      %915 = vmatprep.subr.bf16.mxu0 0
      %916 = vmatpush1.bf16.msra.mxu0 0
      %917 = vmatprep.mubr.bf16.mxu0 0
      %918 = vmatmul.mubr.bf16.gmra.mrb[0].mxu0 %v817
      %v919 = vpop.f32.mrb[0].mxu0
      %v920 = vadd.f32 %v836, %v919
      %v921 = vpop.f32.mrb[0].mxu0
      %v922 = vpop.f32.mrb[0].mxu0
      %v923 = vadd.f32 %v836, %v922
      %v924 = vpop.f32.mrb[0].mxu0
      %925 = vmatprep.mubr.bf16.mxu0 0
      %926 = vmatmul.mubr.bf16.gmra.mrb[0].mxu0 %v818
      %v927 = vpop.f32.mrb[0].mxu0
      %v928 = vadd.f32 %v836, %v927
      %v929 = vpop.f32.mrb[0].mxu0
      %v930 = vpop.f32.mrb[0].mxu0
      %v931 = vadd.f32 %v836, %v930
      %v932 = vpop.f32.mrb[0].mxu0
      %933 = vmatprep.mubr.bf16.mxu0 0
      %934 = vmatmul.mubr.bf16.gmra.mrb[0].mxu0 %v819
      %v935 = vpop.f32.mrb[0].mxu0
      %v936 = vadd.f32 %v836, %v935
      %v937 = vpop.f32.mrb[0].mxu0
      %v938 = vpop.f32.mrb[0].mxu0
      %v939 = vadd.f32 %v836, %v938
      %v940 = vpop.f32.mrb[0].mxu0
      %941 = vmatprep.mubr.bf16.mxu0 0
      %942 = vmatmul.mubr.bf16.gmra.mrb[0].mxu0 %v820
      %v943 = vpop.f32.mrb[0].mxu0
      %v944 = vadd.f32 %v836, %v943
      %v945 = vpop.f32.mrb[0].mxu0
      %v946 = vpop.f32.mrb[0].mxu0
      %v947 = vadd.f32 %v836, %v946
      %v948 = vpop.f32.mrb[0].mxu0
      %949 = vmatprep.mubr.bf16.mxu0 0
      %950 = vmatmul.mubr.bf16.gmra.mrb[0].mxu0 %v821
      %v951 = vpop.f32.mrb[0].mxu0
      %v952 = vadd.f32 %v836, %v951
      %v953 = vpop.f32.mrb[0].mxu0
      %v954 = vpop.f32.mrb[0].mxu0
      %v955 = vadd.f32 %v836, %v954
      %v956 = vpop.f32.mrb[0].mxu0
      %957 = vmatprep.mubr.bf16.mxu0 0
      %958 = vmatmul.mubr.bf16.gmra.mrb[0].mxu0 %v822
      %v959 = vpop.f32.mrb[0].mxu0
      %v960 = vadd.f32 %v836, %v959
      %v961 = vpop.f32.mrb[0].mxu0
      %v962 = vpop.f32.mrb[0].mxu0
      %v963 = vadd.f32 %v836, %v962
      %v964 = vpop.f32.mrb[0].mxu0
      %965 = vmatprep.mubr.bf16.mxu0 0
      %966 = vmatmul.mubr.bf16.gmra.mrb[0].mxu0 %v823
      %v967 = vpop.f32.mrb[0].mxu0
      %v968 = vadd.f32 %v836, %v967
      %v969 = vpop.f32.mrb[0].mxu0
      %v970 = vpop.f32.mrb[0].mxu0
      %v971 = vadd.f32 %v836, %v970
      %v972 = vpop.f32.mrb[0].mxu0
      %973 = vmatprep.mubr.bf16.mxu0 0
      %974 = vmatmul.mubr.bf16.gmra.mrb[0].mxu0 %v824
      %v975 = vpop.f32.mrb[0].mxu0
      %v976 = vadd.f32 %v836, %v975
      %v977 = vpop.f32.mrb[0].mxu0
      %v978 = vpop.f32.mrb[0].mxu0
      %v979 = vadd.f32 %v836, %v978
      %v980 = vpop.f32.mrb[0].mxu0
      %981 = vmatprep.mubr.bf16.mxu0 0
      %982 = vmatmul.mubr.bf16.gmra.mrb[0].mxu0 %v825
      %v983 = vpop.f32.mrb[0].mxu0
      %v984 = vadd.f32 %v836, %v983
      %v985 = vpop.f32.mrb[0].mxu0
      %v986 = vpop.f32.mrb[0].mxu0
      %v987 = vadd.f32 %v836, %v986
      %v988 = vpop.f32.mrb[0].mxu0
      %989 = vmatprep.mubr.bf16.mxu0 0
      %990 = vmatmul.mubr.bf16.gmra.mrb[0].mxu0 %v826
      %v991 = vpop.f32.mrb[0].mxu0
      %v992 = vadd.f32 %v836, %v991
      %v993 = vpop.f32.mrb[0].mxu0
      %v994 = vpop.f32.mrb[0].mxu0
      %v995 = vadd.f32 %v836, %v994
      %v996 = vpop.f32.mrb[0].mxu0
      %997 = vmatprep.mubr.bf16.mxu0 0
      %998 = vmatmul.mubr.bf16.gmra.mrb[0].mxu0 %v827
      %v999 = vpop.f32.mrb[0].mxu0
      %v1000 = vadd.f32 %v836, %v999
      %v1001 = vpop.f32.mrb[0].mxu0
      %v1002 = vpop.f32.mrb[0].mxu0
      %v1003 = vadd.f32 %v836, %v1002
      %v1004 = vpop.f32.mrb[0].mxu0
      %1005 = vmatprep.mubr.bf16.mxu0 0
      %1006 = vmatmul.mubr.bf16.gmra.mrb[0].mxu0 %v828
      %v1007 = vpop.f32.mrb[0].mxu0
      %v1008 = vadd.f32 %v836, %v1007
      %v1009 = vpop.f32.mrb[0].mxu0
      %v1010 = vpop.f32.mrb[0].mxu0
      %v1011 = vadd.f32 %v836, %v1010
      %v1012 = vpop.f32.mrb[0].mxu0
      %1013 = vmatprep.mubr.bf16.mxu0 0
      %1014 = vmatmul.mubr.bf16.gmra.mrb[0].mxu0 %v829
      %v1015 = vpop.f32.mrb[0].mxu0
      %v1016 = vadd.f32 %v836, %v1015
      %v1017 = vpop.f32.mrb[0].mxu0
      %v1018 = vpop.f32.mrb[0].mxu0
      %v1019 = vadd.f32 %v836, %v1018
      %v1020 = vpop.f32.mrb[0].mxu0
      %1021 = vmatprep.mubr.bf16.mxu0 0
      %1022 = vmatmul.mubr.bf16.gmra.mrb[0].mxu0 %v830
      %v1023 = vpop.f32.mrb[0].mxu0
      %v1024 = vadd.f32 %v836, %v1023
      %v1025 = vpop.f32.mrb[0].mxu0
      %v1026 = vpop.f32.mrb[0].mxu0
      %v1027 = vadd.f32 %v836, %v1026
      %v1028 = vpop.f32.mrb[0].mxu0
      %1029 = vmatprep.mubr.bf16.mxu0 0
      %1030 = vmatmul.mubr.bf16.gmra.mrb[0].mxu0 %v831
      %v1031 = vpop.f32.mrb[0].mxu0
      %v1032 = vadd.f32 %v836, %v1031
      %v1033 = vpop.f32.mrb[0].mxu0
      %v1034 = vpop.f32.mrb[0].mxu0
      %v1035 = vadd.f32 %v836, %v1034
      %v1036 = vpop.f32.mrb[0].mxu0
      %1037 = vmatprep.mubr.bf16.mxu0 0
      %1038 = vmatmul.mubr.bf16.gmra.mrb[0].mxu0 %v832
      %v1039 = vpop.f32.mrb[0].mxu0
      %v1040 = vadd.f32 %v836, %v1039
      %v1041 = vpop.f32.mrb[0].mxu0
      %v1042 = vpop.f32.mrb[0].mxu0
      %v1043 = vadd.f32 %v836, %v1042
      %v1044 = vpop.f32.mrb[0].mxu0
      %1045 = vdwg.mxu0
      %v1046 = vmax.f32 %v920, 0.0
      %v1047 = vmax.f32 %v923, 0.0
      %v1048 = vmax.f32 %v928, 0.0
      %v1049 = vmax.f32 %v931, 0.0
      %v1050 = vmax.f32 %v936, 0.0
      %v1051 = vmax.f32 %v939, 0.0
      %v1052 = vmax.f32 %v944, 0.0
      %v1053 = vmax.f32 %v947, 0.0
      %v1054 = vmax.f32 %v952, 0.0
      %v1055 = vmax.f32 %v955, 0.0
      %v1056 = vmax.f32 %v960, 0.0
      %v1057 = vmax.f32 %v963, 0.0
      %v1058 = vmax.f32 %v968, 0.0
      %v1059 = vmax.f32 %v971, 0.0
      %v1060 = vmax.f32 %v976, 0.0
      %v1061 = vmax.f32 %v979, 0.0
      %v1062 = vmax.f32 %v984, 0.0
      %v1063 = vmax.f32 %v987, 0.0
      %v1064 = vmax.f32 %v992, 0.0
      %v1065 = vmax.f32 %v995, 0.0
      %v1066 = vmax.f32 %v1000, 0.0
      %v1067 = vmax.f32 %v1003, 0.0
      %v1068 = vmax.f32 %v1008, 0.0
      %v1069 = vmax.f32 %v1011, 0.0
      %v1070 = vmax.f32 %v1016, 0.0
      %v1071 = vmax.f32 %v1019, 0.0
      %v1072 = vmax.f32 %v1024, 0.0
      %v1073 = vmax.f32 %v1027, 0.0
      %v1074 = vmax.f32 %v1032, 0.0
      %v1075 = vmax.f32 %v1035, 0.0
      %v1076 = vmax.f32 %v1040, 0.0
      %v1077 = vmax.f32 %v1043, 0.0
      %v1078 = vpack.c.bf16 %v1047, %v1046
      %v1079 = vpack.c.bf16 %v1049, %v1048
      %v1080 = vpack.c.bf16 %v1051, %v1050
      %v1081 = vpack.c.bf16 %v1053, %v1052
      %v1082 = vpack.c.bf16 %v1055, %v1054
      %v1083 = vpack.c.bf16 %v1057, %v1056
      %v1084 = vpack.c.bf16 %v1059, %v1058
      %v1085 = vpack.c.bf16 %v1061, %v1060
      %v1086 = vpack.c.bf16 %v1063, %v1062
      %v1087 = vpack.c.bf16 %v1065, %v1064
      %v1088 = vpack.c.bf16 %v1067, %v1066
      %v1089 = vpack.c.bf16 %v1069, %v1068
      %v1090 = vpack.c.bf16 %v1071, %v1070
      %v1091 = vpack.c.bf16 %v1073, %v1072
      %v1092 = vpack.c.bf16 %v1075, %v1074
      %v1093 = vpack.c.bf16 %v1077, %v1076
      %v1094 = vlaneseq
      %v1095 = vshrl.u32 %v1094, 7
      %v1096 = vsub.s32 0, %v1095
      %v1097 = vrot.slane %v237, %v1096
      %v1114 = vunpack.c.l.b16 %v218
      %v1115 = vunpack.c.l.b16 %v219
      %v1116 = vunpack.c.l.b16 %v220
      %v1117 = vunpack.c.l.b16 %v221
      %v1118 = vunpack.c.l.b16 %v222
      %v1119 = vunpack.c.l.b16 %v223
      %v1120 = vunpack.c.l.b16 %v224
      %v1121 = vunpack.c.l.b16 %v225
      %v1122 = vunpack.c.l.b16 %v226
      %v1123 = vunpack.c.l.b16 %v227
      %v1124 = vunpack.c.l.b16 %v228
      %v1125 = vunpack.c.l.b16 %v229
      %v1126 = vunpack.c.l.b16 %v230
      %v1127 = vunpack.c.l.b16 %v231
      %v1128 = vunpack.c.l.b16 %v232
      %v1129 = vunpack.c.l.b16 %v233
      %v1130 = vpack.c.b16 %v1115, %v1114
      %v1131 = vpack.c.b16 %v1117, %v1116
      %v1132 = vpack.c.b16 %v1119, %v1118
      %v1133 = vpack.c.b16 %v1121, %v1120
      %v1134 = vpack.c.b16 %v1123, %v1122
      %v1135 = vpack.c.b16 %v1125, %v1124
      %v1136 = vpack.c.b16 %v1127, %v1126
      %v1137 = vpack.c.b16 %v1129, %v1128
      %1146 = vmatprep.subr.bf16.mxu0 0
      %1147 = vmatpush1.bf16.msra.mxu0 %v1130
      %1148 = vmatprep.subr.bf16.mxu0 0
      %1149 = vmatpush1.bf16.msra.mxu0 %v1131
      %1150 = vmatprep.subr.bf16.mxu0 0
      %1151 = vmatpush1.bf16.msra.mxu0 %v1132
      %1152 = vmatprep.subr.bf16.mxu0 0
      %1153 = vmatpush1.bf16.msra.mxu0 %v1133
      %1154 = vmatprep.subr.bf16.mxu0 0
      %1155 = vmatpush1.bf16.msra.mxu0 %v1134
      %1156 = vmatprep.subr.bf16.mxu0 0
      %1157 = vmatpush1.bf16.msra.mxu0 %v1135
      %1158 = vmatprep.subr.bf16.mxu0 0
      %1159 = vmatpush1.bf16.msra.mxu0 %v1136
      %1160 = vmatprep.subr.bf16.mxu0 0
      %1161 = vmatpush1.bf16.msra.mxu0 %v1137
      %1162 = vmatprep.subr.bf16.mxu0 0
      %1163 = vmatpush1.bf16.msra.mxu0 0
      %1164 = vmatprep.subr.bf16.mxu0 0
      %1165 = vmatpush1.bf16.msra.mxu0 0
      %1166 = vmatprep.subr.bf16.mxu0 0
      %1167 = vmatpush1.bf16.msra.mxu0 0
      %1168 = vmatprep.subr.bf16.mxu0 0
      %1169 = vmatpush1.bf16.msra.mxu0 0
      %1170 = vmatprep.subr.bf16.mxu0 0
      %1171 = vmatpush1.bf16.msra.mxu0 0
      %1172 = vmatprep.subr.bf16.mxu0 0
      %1173 = vmatpush1.bf16.msra.mxu0 0
      %1174 = vmatprep.subr.bf16.mxu0 0
      %1175 = vmatpush1.bf16.msra.mxu0 0
      %1176 = vmatprep.subr.bf16.mxu0 0
      %1177 = vmatpush1.bf16.msra.mxu0 0
      %1178 = vmatprep.mubr.bf16.mxu0 0
      %1179 = vmatmul.mubr.bf16.gmra.mrb[0].mxu0 %v1078
      %v1180 = vpop.f32.mrb[0].mxu0
      %v1181 = vadd.f32 %v1097, %v1180
      %v1182 = vpop.f32.mrb[0].mxu0
      %v1183 = vpop.f32.mrb[0].mxu0
      %v1184 = vadd.f32 %v1097, %v1183
      %v1185 = vpop.f32.mrb[0].mxu0
      %1186 = vmatprep.mubr.bf16.mxu0 0
      %1187 = vmatmul.mubr.bf16.gmra.mrb[0].mxu0 %v1079
      %v1188 = vpop.f32.mrb[0].mxu0
      %v1189 = vadd.f32 %v1097, %v1188
      %v1190 = vpop.f32.mrb[0].mxu0
      %v1191 = vpop.f32.mrb[0].mxu0
      %v1192 = vadd.f32 %v1097, %v1191
      %v1193 = vpop.f32.mrb[0].mxu0
      %1194 = vmatprep.mubr.bf16.mxu0 0
      %1195 = vmatmul.mubr.bf16.gmra.mrb[0].mxu0 %v1080
      %v1196 = vpop.f32.mrb[0].mxu0
      %v1197 = vadd.f32 %v1097, %v1196
      %v1198 = vpop.f32.mrb[0].mxu0
      %v1199 = vpop.f32.mrb[0].mxu0
      %v1200 = vadd.f32 %v1097, %v1199
      %v1201 = vpop.f32.mrb[0].mxu0
      %1202 = vmatprep.mubr.bf16.mxu0 0
      %1203 = vmatmul.mubr.bf16.gmra.mrb[0].mxu0 %v1081
      %v1204 = vpop.f32.mrb[0].mxu0
      %v1205 = vadd.f32 %v1097, %v1204
      %v1206 = vpop.f32.mrb[0].mxu0
      %v1207 = vpop.f32.mrb[0].mxu0
      %v1208 = vadd.f32 %v1097, %v1207
      %v1209 = vpop.f32.mrb[0].mxu0
      %1210 = vmatprep.mubr.bf16.mxu0 0
      %1211 = vmatmul.mubr.bf16.gmra.mrb[0].mxu0 %v1082
      %v1212 = vpop.f32.mrb[0].mxu0
      %v1213 = vadd.f32 %v1097, %v1212
      %v1214 = vpop.f32.mrb[0].mxu0
      %v1215 = vpop.f32.mrb[0].mxu0
      %v1216 = vadd.f32 %v1097, %v1215
      %v1217 = vpop.f32.mrb[0].mxu0
      %1218 = vmatprep.mubr.bf16.mxu0 0
      %1219 = vmatmul.mubr.bf16.gmra.mrb[0].mxu0 %v1083
      %v1220 = vpop.f32.mrb[0].mxu0
      %v1221 = vadd.f32 %v1097, %v1220
      %v1222 = vpop.f32.mrb[0].mxu0
      %v1223 = vpop.f32.mrb[0].mxu0
      %v1224 = vadd.f32 %v1097, %v1223
      %v1225 = vpop.f32.mrb[0].mxu0
      %1226 = vmatprep.mubr.bf16.mxu0 0
      %1227 = vmatmul.mubr.bf16.gmra.mrb[0].mxu0 %v1084
      %v1228 = vpop.f32.mrb[0].mxu0
      %v1229 = vadd.f32 %v1097, %v1228
      %v1230 = vpop.f32.mrb[0].mxu0
      %v1231 = vpop.f32.mrb[0].mxu0
      %v1232 = vadd.f32 %v1097, %v1231
      %v1233 = vpop.f32.mrb[0].mxu0
      %1234 = vmatprep.mubr.bf16.mxu0 0
      %1235 = vmatmul.mubr.bf16.gmra.mrb[0].mxu0 %v1085
      %v1236 = vpop.f32.mrb[0].mxu0
      %v1237 = vadd.f32 %v1097, %v1236
      %v1238 = vpop.f32.mrb[0].mxu0
      %v1239 = vpop.f32.mrb[0].mxu0
      %v1240 = vadd.f32 %v1097, %v1239
      %v1241 = vpop.f32.mrb[0].mxu0
      %1242 = vmatprep.mubr.bf16.mxu0 0
      %1243 = vmatmul.mubr.bf16.gmra.mrb[0].mxu0 %v1086
      %v1244 = vpop.f32.mrb[0].mxu0
      %v1245 = vadd.f32 %v1097, %v1244
      %v1246 = vpop.f32.mrb[0].mxu0
      %v1247 = vpop.f32.mrb[0].mxu0
      %v1248 = vadd.f32 %v1097, %v1247
      %v1249 = vpop.f32.mrb[0].mxu0
      %1250 = vmatprep.mubr.bf16.mxu0 0
      %1251 = vmatmul.mubr.bf16.gmra.mrb[0].mxu0 %v1087
      %v1252 = vpop.f32.mrb[0].mxu0
      %v1253 = vadd.f32 %v1097, %v1252
      %v1254 = vpop.f32.mrb[0].mxu0
      %v1255 = vpop.f32.mrb[0].mxu0
      %v1256 = vadd.f32 %v1097, %v1255
      %v1257 = vpop.f32.mrb[0].mxu0
      %1258 = vmatprep.mubr.bf16.mxu0 0
      %1259 = vmatmul.mubr.bf16.gmra.mrb[0].mxu0 %v1088
      %v1260 = vpop.f32.mrb[0].mxu0
      %v1261 = vadd.f32 %v1097, %v1260
      %v1262 = vpop.f32.mrb[0].mxu0
      %v1263 = vpop.f32.mrb[0].mxu0
      %v1264 = vadd.f32 %v1097, %v1263
      %v1265 = vpop.f32.mrb[0].mxu0
      %1266 = vmatprep.mubr.bf16.mxu0 0
      %1267 = vmatmul.mubr.bf16.gmra.mrb[0].mxu0 %v1089
      %v1268 = vpop.f32.mrb[0].mxu0
      %v1269 = vadd.f32 %v1097, %v1268
      %v1270 = vpop.f32.mrb[0].mxu0
      %v1271 = vpop.f32.mrb[0].mxu0
      %v1272 = vadd.f32 %v1097, %v1271
      %v1273 = vpop.f32.mrb[0].mxu0
      %1274 = vmatprep.mubr.bf16.mxu0 0
      %1275 = vmatmul.mubr.bf16.gmra.mrb[0].mxu0 %v1090
      %v1276 = vpop.f32.mrb[0].mxu0
      %v1277 = vadd.f32 %v1097, %v1276
      %v1278 = vpop.f32.mrb[0].mxu0
      %v1279 = vpop.f32.mrb[0].mxu0
      %v1280 = vadd.f32 %v1097, %v1279
      %v1281 = vpop.f32.mrb[0].mxu0
      %1282 = vmatprep.mubr.bf16.mxu0 0
      %1283 = vmatmul.mubr.bf16.gmra.mrb[0].mxu0 %v1091
      %v1284 = vpop.f32.mrb[0].mxu0
      %v1285 = vadd.f32 %v1097, %v1284
      %v1286 = vpop.f32.mrb[0].mxu0
      %v1287 = vpop.f32.mrb[0].mxu0
      %v1288 = vadd.f32 %v1097, %v1287
      %v1289 = vpop.f32.mrb[0].mxu0
      %1290 = vmatprep.mubr.bf16.mxu0 0
      %1291 = vmatmul.mubr.bf16.gmra.mrb[0].mxu0 %v1092
      %v1292 = vpop.f32.mrb[0].mxu0
      %v1293 = vadd.f32 %v1097, %v1292
      %v1294 = vpop.f32.mrb[0].mxu0
      %v1295 = vpop.f32.mrb[0].mxu0
      %v1296 = vadd.f32 %v1097, %v1295
      %v1297 = vpop.f32.mrb[0].mxu0
      %1298 = vmatprep.mubr.bf16.mxu0 0
      %1299 = vmatmul.mubr.bf16.gmra.mrb[0].mxu0 %v1093
      %v1300 = vpop.f32.mrb[0].mxu0
      %v1301 = vadd.f32 %v1097, %v1300
      %v1302 = vpop.f32.mrb[0].mxu0
      %v1303 = vpop.f32.mrb[0].mxu0
      %v1304 = vadd.f32 %v1097, %v1303
      %v1305 = vpop.f32.mrb[0].mxu0
      %1306 = vdwg.mxu0
      %vm1307 = vcmask 80896
      %1308 = vst.msk [vmem:[%s172] sm:$0xff] %vm1307, %v1181
      %1309 = vst.msk [vmem:[%s172 + $0x8] sm:$0xff] %vm1307, %v1184
      %1310 = vst.msk [vmem:[%s172 + $0x10] sm:$0xff] %vm1307, %v1189
      %1311 = vst.msk [vmem:[%s172 + $0x18] sm:$0xff] %vm1307, %v1192
      %1312 = vst.msk [vmem:[%s172 + $0x20] sm:$0xff] %vm1307, %v1197
      %1313 = vst.msk [vmem:[%s172 + $0x28] sm:$0xff] %vm1307, %v1200
      %1314 = vst.msk [vmem:[%s172 + $0x30] sm:$0xff] %vm1307, %v1205
      %1315 = vst.msk [vmem:[%s172 + $0x38] sm:$0xff] %vm1307, %v1208
      %1316 = vst.msk [vmem:[%s172 + $0x40] sm:$0xff] %vm1307, %v1213
      %1317 = vst.msk [vmem:[%s172 + $0x48] sm:$0xff] %vm1307, %v1216
      %1318 = vst.msk [vmem:[%s172 + $0x50] sm:$0xff] %vm1307, %v1221
      %1319 = vst.msk [vmem:[%s172 + $0x58] sm:$0xff] %vm1307, %v1224
      %1320 = vst.msk [vmem:[%s172 + $0x60] sm:$0xff] %vm1307, %v1229
      %1321 = vst.msk [vmem:[%s172 + $0x68] sm:$0xff] %vm1307, %v1232
      %1322 = vst.msk [vmem:[%s172 + $0x70] sm:$0xff] %vm1307, %v1237
      %1323 = vst.msk [vmem:[%s172 + $0x78] sm:$0xff] %vm1307, %v1240
      %1324 = vst.msk [vmem:[%s172 + $0x80] sm:$0xff] %vm1307, %v1245
      %1325 = vst.msk [vmem:[%s172 + $0x88] sm:$0xff] %vm1307, %v1248
      %1326 = vst.msk [vmem:[%s172 + $0x90] sm:$0xff] %vm1307, %v1253
      %1327 = vst.msk [vmem:[%s172 + $0x98] sm:$0xff] %vm1307, %v1256
      %1328 = vst.msk [vmem:[%s172 + $0xa0] sm:$0xff] %vm1307, %v1261
      %1329 = vst.msk [vmem:[%s172 + $0xa8] sm:$0xff] %vm1307, %v1264
      %1330 = vst.msk [vmem:[%s172 + $0xb0] sm:$0xff] %vm1307, %v1269
      %1331 = vst.msk [vmem:[%s172 + $0xb8] sm:$0xff] %vm1307, %v1272
      %1332 = vst.msk [vmem:[%s172 + $0xc0] sm:$0xff] %vm1307, %v1277
      %1333 = vst.msk [vmem:[%s172 + $0xc8] sm:$0xff] %vm1307, %v1280
      %1334 = vst.msk [vmem:[%s172 + $0xd0] sm:$0xff] %vm1307, %v1285
      %1335 = vst.msk [vmem:[%s172 + $0xd8] sm:$0xff] %vm1307, %v1288
      %1336 = vst.msk [vmem:[%s172 + $0xe0] sm:$0xff] %vm1307, %v1293
      %1337 = vst.msk [vmem:[%s172 + $0xe8] sm:$0xff] %vm1307, %v1296
      %1338 = vst.msk [vmem:[%s172 + $0xf0] sm:$0xff] %vm1307, %v1301
      %1339 = vst.msk [vmem:[%s172 + $0xf8] sm:$0xff] %vm1307, %v1304
      %s1340 = smul.u32 32, %s14
      %p1341 = scmp.lt.s32.totalorder %s1340, 63
      %s1342 = scalar_select %p1341, %s1340, 63
      %s1343 = smul.addr %s1342, 8
      %s1344 = scalar_lea.vmem %s3, %s1343
      // Predicated region
      $region33: #{tpu_custom_call.1} parent=31 // pred_check
        %p1345 = pneg %p100
      $region34: #{tpu_custom_call.1} parent=31 // pred_check_branch
        %1347 = sbr.rel (%p1345) target = $region36
      $region35: #{tpu_custom_call.1} parent=31 // pred_region
        %s1348 = smul.u32 32, %s14
      $region36: #{tpu_custom_call.1} parent=31 // pred_fallthru
        _
    $region32: #{tpu_custom_call.1} parent=5 // pred_fallthru
      _
    %p1349 = scmp.le.s32.totalorder 2, %s9
    // Predicated region
    $region37: #{tpu_custom_call.1} parent=5 // pred_check
      %p1350 = pneg %p1349
    $region38: #{tpu_custom_call.1} parent=5 // pred_check_branch
      %1352 = sbr.rel (%p1350) target = $region40
    $region39: #{tpu_custom_call.1} parent=5 // pred_region
      %s1353 = ssub.s32 %s9, 2
      // Predicated region
      $region41: #{tpu_custom_call.1} parent=39 // pred_check
        %p1354 = pneg %p106
      $region42: #{tpu_custom_call.1} parent=39 // pred_check_branch
        %1356 = sbr.rel (%p1354) target = $region44
      $region43: #{tpu_custom_call.1} parent=39 // pred_region
        %s1357 = smul.u32 32, %s15
        %p1358 = scmp.lt.s32.totalorder %s1357, 63
        %s1359 = scalar_select %p1358, %s1357, 63
        %s1360 = smul.addr %s1359, 8
        %s1361 = scalar_lea.vmem %s3, %s1360
      $region44: #{tpu_custom_call.1} parent=39 // pred_fallthru
        _
    $region40: #{tpu_custom_call.1} parent=5 // pred_fallthru
      _
  $region6: #{tpu_custom_call.1} parent=0 // loop_footer
    %s13 = sadd.s32 1, %s9
  $region7: #{tpu_custom_call.1} parent=0 // loop_footer_branch
    %8 = sbr.rel target = $region3
  $region8: #{tpu_custom_call.1} parent=0 // loop_exit
    _

</llo_original>
